<compile_context>
chip_gen: v5e
topology: v5e:2x2
jax: 0.10.0
libtpu: 0.0.40
codegen_flags: <defaults>
</compile_context>

<pallas_src>
import jax
import jax.numpy as jnp
from jax.experimental import pallas as pl
from jax.experimental.pallas import tpu as pltpu


def _round_up(x, m):
    return ((x + m - 1) // m) * m


def _mlp_kernel(x_ref, w1_ref, b1_ref, w2_ref, b2_ref, o_ref):
    # hidden = relu(x @ W1 + b1): f32 MXU accumulation, f32 VPU epilogue.
    x = x_ref[...].astype(w1_ref.dtype)          # in-kernel operand cast (no HBM copy)
    h = jnp.dot(x, w1_ref[...], preferred_element_type=jnp.float32)
    h = jnp.maximum(h + b1_ref[...], 0.0)        # (1, H_p) bias row-broadcast
    # out = hidden @ W2 + b2
    y = jnp.dot(h.astype(w2_ref.dtype), w2_ref[...],
                preferred_element_type=jnp.float32)
    o_ref[...] = (y + b2_ref[...]).astype(o_ref.dtype)


def _choose_tile_b(B, F, H_p, O_p, x_itemsize, cd_itemsize, out_itemsize,
                   budget, resident, x_buffers):
    """Budget-derived batch tile (rows)."""
    # Per-row VMEM cost of one batch tile: pipelined x tiles, a cast copy of the
    # x tile, double-buffered out tiles, the f32 hidden intermediate + its cast.
    per_row = (x_buffers * F * x_itemsize
               + F * cd_itemsize
               + 2 * O_p * out_itemsize
               + H_p * (4 + cd_itemsize))
    avail = budget - resident - (2 << 20)        # ~2 MiB slack for compiler scratch
    if avail < 8 * per_row:
        # TODO(synk): K/N-tiled fallback (extra "arbitrary" grid axis + f32 VMEM
        # accumulator) for weights too large to keep VMEM-resident (v7x: 64 MiB).
        raise ValueError(
            "Resident weights + minimum batch tile exceed the VMEM budget "
            f"({budget} bytes); use compute_dtype=jnp.bfloat16 or raise "
            "vmem_budget_bytes.")
    cap = int(avail // per_row)
    pref = 16 if cd_itemsize <= 2 else 8         # bf16 packs 2 rows / sublane
    # v7x megacore: clamp so the batch splits into >= 2 grid steps when possible.
    half = _round_up(-(-B // 2), pref)
    tile_b = min(cap, max(pref, half))
    tile_b = max(pref, (tile_b // pref) * pref)
    if tile_b >= B:
        # Single block; block dim == full array dim is always legal (any B).
        return B
    # Multiple blocks: keep a multiple of 8.  Pallas handles the partial last
    # block (out-of-bounds rows read garbage; their output rows are discarded,
    # and each output row depends only on its own x row, so this is exact).
    return max(8, (tile_b // 8) * 8)


def net_forward(x, w1, b1, w2, b2, *,
                compute_dtype=jnp.float32,
                out_dtype=None,
                x_buffers=2,
                vmem_budget_bytes=28 << 20):
    """Forward pass of Net: out = relu(x @ W1.T + b1) @ W2.T + b2.

    x : (B, F)
    w1: (H, F), b1: (H,)     -- PyTorch nn.Linear layout (out, in)
    w2: (O, H), b2: (O,)
    compute_dtype : MXU operand dtype.  jnp.bfloat16 is the recommended fast
        path on every generation (v5e's MXU is bf16-native too); accumulation,
        bias add and ReLU stay f32.  Default f32 keeps exact PyTorch semantics.
    out_dtype : output dtype (default x.dtype).  jnp.bfloat16 halves writeback.
    x_buffers : pipeline depth for x tiles (raise to 3 if a profile shows
        exposed x DMA on mem-bound shapes; cheap since weights are
        single-buffered).
    vmem_budget_bytes : VMEM budget used to derive the batch tile and set
        Mosaic's vmem limit.  28 MiB is safe on v5e / v6e / v7x.
    """
    B, F = x.shape
    H = w1.shape[0]
    O = w2.shape[0]
    out_dtype = x.dtype if out_dtype is None else out_dtype

    # Lane-dense padding of hidden / output dims (multiples of 128).  One-time,
    # weight-sized XLA ops; x itself is never copied or padded.
    H_p = _round_up(H, 128)
    O_p = _round_up(O, 128)

    x_itemsize = jnp.dtype(x.dtype).itemsize
    cd_itemsize = jnp.dtype(compute_dtype).itemsize
    out_itemsize = jnp.dtype(out_dtype).itemsize

    # VMEM-resident, single-buffered operands: W1, b1, W2, b2.
    resident = (F * H_p + H_p * O_p) * cd_itemsize + (H_p + O_p) * 4

    tile_b = _choose_tile_b(B, F, H_p, O_p, x_itemsize, cd_itemsize,
                            out_itemsize, vmem_budget_bytes, resident, x_buffers)
    grid_n = pl.cdiv(B, tile_b)

    # One-time weight / bias prep: transpose to (in, out), zero-pad, cast.
    # Zero padding is exact: padded hidden units see zero weight/bias -> relu(0)=0,
    # and padded W2 rows / output columns are zero (sliced off at the end).
    w1_t = jnp.zeros((F, H_p), compute_dtype).at[:, :H].set(w1.T.astype(compute_dtype))
    w2_t = jnp.zeros((H_p, O_p), compute_dtype).at[:H, :O].set(w2.T.astype(compute_dtype))
    b1_p = jnp.zeros((1, H_p), jnp.float32).at[:, :H].set(b1.astype(jnp.float32))
    b2_p = jnp.zeros((1, O_p), jnp.float32).at[:, :O].set(b2.astype(jnp.float32))

    def run(single_buffer_weights):
        res_kw = ({"pipeline_mode": pl.Buffered(1)}
                  if single_buffer_weights else {})
        x_kw = ({"pipeline_mode": pl.Buffered(x_buffers)}
                if (x_buffers != 2 and single_buffer_weights) else {})
        return pl.pallas_call(
            _mlp_kernel,
            out_shape=jax.ShapeDtypeStruct((B, O_p), out_dtype),
            grid=(grid_n,),
            in_specs=[
                pl.BlockSpec((tile_b, F), lambda i: (i, 0), **x_kw),   # x: batch-tiled
                pl.BlockSpec((F, H_p), lambda i: (0, 0), **res_kw),    # W1: resident
                pl.BlockSpec((1, H_p), lambda i: (0, 0), **res_kw),    # b1: resident
                pl.BlockSpec((H_p, O_p), lambda i: (0, 0), **res_kw),  # W2: resident
                pl.BlockSpec((1, O_p), lambda i: (0, 0), **res_kw),    # b2: resident
            ],
            out_specs=pl.BlockSpec((tile_b, O_p), lambda i: (i, 0)),
            compiler_params=pltpu.CompilerParams(
                dimension_semantics=("parallel",),     # shard batch tiles across TCs
                vmem_limit_bytes=int(vmem_budget_bytes),
            ),
        )(x, w1_t, b1_p, w2_t, b2_p)

    try:
        out_p = run(single_buffer_weights=True)
    except Exception:   # pipeline_mode / Buffered(1) unsupported on this jax build
        out_p = run(single_buffer_weights=False)

    return out_p if O == O_p else out_p[:, :O]


if __name__ == "__main__":
    # Small shapes consistent with Net(n_feature, n_hidden, n_output).
    B, n_feature, n_hidden, n_output = 8, 64, 32, 16

    key = jax.random.PRNGKey(0)
    kx, kw1, kb1, kw2, kb2 = jax.random.split(key, 5)

    x = jax.random.normal(kx, (B, n_feature), dtype=jnp.float32)
    # PyTorch nn.Linear stores weight as (out, in).
    w1 = jax.random.normal(kw1, (n_hidden, n_feature), dtype=jnp.float32) * 0.1
    b1 = jax.random.normal(kb1, (n_hidden,), dtype=jnp.float32) * 0.1
    w2 = jax.random.normal(kw2, (n_output, n_hidden), dtype=jnp.float32) * 0.1
    b2 = jax.random.normal(kb2, (n_output,), dtype=jnp.float32) * 0.1

    # Reference in plain JAX (same math as the PyTorch forward).
    ref = jnp.maximum(x @ w1.T + b1, 0.0) @ w2.T + b2

    # Exact f32 operand path.
    out = net_forward(x, w1, b1, w2, b2)
    jax.block_until_ready(out)
    assert out.shape == (B, n_output)
    assert jnp.allclose(out, ref, atol=1e-5, rtol=1e-5)

    # bf16 fast path (recommended on v5e/v6e/v7x); f32 accumulation -> loose tol.
    out_bf16 = net_forward(x, w1, b1, w2, b2, compute_dtype=jnp.bfloat16)
    jax.block_until_ready(out_bf16)
    assert out_bf16.shape == (B, n_output)
    assert jnp.allclose(out_bf16, ref, atol=5e-2, rtol=5e-2)

    print("KERNEL_OK")
</pallas_src>

<mosaic_0001>
module attributes {stable_mosaic.version = 11 : i64} {
  func.func @_mlp_kernel(%arg0: i32, %arg1: memref<8x64xf32, #tpu.memory_space<vmem>>, %arg2: memref<64x128xf32, #tpu.memory_space<vmem>>, %arg3: memref<1x128xf32, #tpu.memory_space<vmem>>, %arg4: memref<128x128xf32, #tpu.memory_space<vmem>>, %arg5: memref<1x128xf32, #tpu.memory_space<vmem>>, %arg6: memref<8x128xf32, #tpu.memory_space<vmem>>) attributes {dimension_semantics = [#tpu.dimension_semantics<parallel>], iteration_bounds = array<i64: 1>, scalar_prefetch = 0 : i64, scratch_operands = 0 : i64, tpu.core_type = #tpu.core_type<tc>, window_params = [{transform_indices = @transform_0, window_bounds = array<i64: 8, 64>}, {pipeline_mode = #tpu.pipeline_mode<synchronous>, transform_indices = @transform_1, window_bounds = array<i64: 64, 128>}, {pipeline_mode = #tpu.pipeline_mode<synchronous>, transform_indices = @transform_2, window_bounds = array<i64: 1, 128>}, {pipeline_mode = #tpu.pipeline_mode<synchronous>, transform_indices = @transform_3, window_bounds = array<i64: 128, 128>}, {pipeline_mode = #tpu.pipeline_mode<synchronous>, transform_indices = @transform_4, window_bounds = array<i64: 1, 128>}, {transform_indices = @transform_5, window_bounds = array<i64: 8, 128>}]} {
    %c0 = arith.constant 0 : index
    %c0_0 = arith.constant 0 : index
    %0 = vector.load %arg1[%c0, %c0_0] : memref<8x64xf32, #tpu.memory_space<vmem>>, vector<8x64xf32>
    %c0_1 = arith.constant 0 : index
    %c0_2 = arith.constant 0 : index
    %1 = vector.load %arg2[%c0_1, %c0_2] : memref<64x128xf32, #tpu.memory_space<vmem>>, vector<64x128xf32>
    %cst = arith.constant dense<0.000000e+00> : vector<8x128xf32>
    %2 = tpu.matmul %0, %1, %cst {dimension_numbers = #tpu.dot_dimension_numbers<[1], [0], [0], [1], [0, 0, 1, 1], [], []>} : vector<8x64xf32>, vector<64x128xf32>, vector<8x128xf32> -> vector<8x128xf32>
    %c0_3 = arith.constant 0 : index
    %c0_4 = arith.constant 0 : index
    %3 = vector.load %arg3[%c0_3, %c0_4] : memref<1x128xf32, #tpu.memory_space<vmem>>, vector<1x128xf32>
    %4 = vector.broadcast %3 : vector<1x128xf32> to vector<8x128xf32>
    %5 = arith.addf %2, %4 : vector<8x128xf32>
    %cst_5 = arith.constant 0.000000e+00 : f32
    %6 = vector.broadcast %cst_5 : f32 to vector<8x128xf32>
    %7 = arith.maximumf %5, %6 : vector<8x128xf32>
    %c0_6 = arith.constant 0 : index
    %c0_7 = arith.constant 0 : index
    %8 = vector.load %arg4[%c0_6, %c0_7] : memref<128x128xf32, #tpu.memory_space<vmem>>, vector<128x128xf32>
    %cst_8 = arith.constant dense<0.000000e+00> : vector<8x128xf32>
    %9 = tpu.matmul %7, %8, %cst_8 {dimension_numbers = #tpu.dot_dimension_numbers<[1], [0], [0], [1], [0, 0, 1, 1], [], []>} : vector<8x128xf32>, vector<128x128xf32>, vector<8x128xf32> -> vector<8x128xf32>
    %c0_9 = arith.constant 0 : index
    %c0_10 = arith.constant 0 : index
    %10 = vector.load %arg5[%c0_9, %c0_10] : memref<1x128xf32, #tpu.memory_space<vmem>>, vector<1x128xf32>
    %11 = vector.broadcast %10 : vector<1x128xf32> to vector<8x128xf32>
    %12 = arith.addf %9, %11 : vector<8x128xf32>
    %c0_11 = arith.constant 0 : index
    %c0_12 = arith.constant 0 : index
    %13 = vector.load %arg6[%c0_11, %c0_12] : memref<8x128xf32, #tpu.memory_space<vmem>>, vector<8x128xf32>
    tpu.vector_store %arg6[%c0_11, %c0_12], %12 {strides = array<i32>} : memref<8x128xf32, #tpu.memory_space<vmem>>, vector<8x128xf32>,
    return
  }
  func.func @transform_0(%arg0: i32) -> (i32, i32) {
    %c0_i32 = arith.constant 0 : i32
    %c0_i32_0 = arith.constant 0 : i32
    return %arg0, %c0_i32 : i32, i32
  }
  func.func @transform_1(%arg0: i32) -> (i32, i32) {
    %c0_i32 = arith.constant 0 : i32
    %c0_i32_0 = arith.constant 0 : i32
    %c0_i32_1 = arith.constant 0 : i32
    return %c0_i32, %c0_i32_0 : i32, i32
  }
  func.func @transform_2(%arg0: i32) -> (i32, i32) {
    %c0_i32 = arith.constant 0 : i32
    %c0_i32_0 = arith.constant 0 : i32
    %c0_i32_1 = arith.constant 0 : i32
    return %c0_i32, %c0_i32_0 : i32, i32
  }
  func.func @transform_3(%arg0: i32) -> (i32, i32) {
    %c0_i32 = arith.constant 0 : i32
    %c0_i32_0 = arith.constant 0 : i32
    %c0_i32_1 = arith.constant 0 : i32
    return %c0_i32, %c0_i32_0 : i32, i32
  }
  func.func @transform_4(%arg0: i32) -> (i32, i32) {
    %c0_i32 = arith.constant 0 : i32
    %c0_i32_0 = arith.constant 0 : i32
    %c0_i32_1 = arith.constant 0 : i32
    return %c0_i32, %c0_i32_0 : i32, i32
  }
  func.func @transform_5(%arg0: i32) -> (i32, i32) {
    %c0_i32 = arith.constant 0 : i32
    %c0_i32_0 = arith.constant 0 : i32
    return %arg0, %c0_i32 : i32, i32
  }
}

module attributes {stable_mosaic.version = 11 : i64} {
  func.func @_mlp_kernel(%arg0: i32, %arg1: memref<8x64xf32, #tpu.memory_space<vmem>>, %arg2: memref<64x128xf32, #tpu.memory_space<vmem>>, %arg3: memref<1x128xf32, #tpu.memory_space<vmem>>, %arg4: memref<128x128xf32, #tpu.memory_space<vmem>>, %arg5: memref<1x128xf32, #tpu.memory_space<vmem>>, %arg6: memref<8x128xf32, #tpu.memory_space<vmem>>) attributes {dimension_semantics = [#tpu.dimension_semantics<parallel>], iteration_bounds = array<i64: 1>, scalar_prefetch = 0 : i64, scratch_operands = 0 : i64, tpu.core_type = #tpu.core_type<tc>, window_params = [{transform_indices = @transform_0, window_bounds = array<i64: 8, 64>}, {pipeline_mode = #tpu.pipeline_mode<synchronous>, transform_indices = @transform_1, window_bounds = array<i64: 64, 128>}, {pipeline_mode = #tpu.pipeline_mode<synchronous>, transform_indices = @transform_2, window_bounds = array<i64: 1, 128>}, {pipeline_mode = #tpu.pipeline_mode<synchronous>, transform_indices = @transform_3, window_bounds = array<i64: 128, 128>}, {pipeline_mode = #tpu.pipeline_mode<synchronous>, transform_indices = @transform_4, window_bounds = array<i64: 1, 128>}, {transform_indices = @transform_5, window_bounds = array<i64: 8, 128>}]} {
    %c0 = arith.constant 0 : index
    %c0_0 = arith.constant 0 : index
    %0 = vector.load %arg1[%c0, %c0_0] : memref<8x64xf32, #tpu.memory_space<vmem>>, vector<8x64xf32>
    %c0_1 = arith.constant 0 : index
    %c0_2 = arith.constant 0 : index
    %1 = vector.load %arg2[%c0_1, %c0_2] : memref<64x128xf32, #tpu.memory_space<vmem>>, vector<64x128xf32>
    %cst = arith.constant dense<0.000000e+00> : vector<8x128xf32>
    %2 = tpu.matmul %0, %1, %cst {dimension_numbers = #tpu.dot_dimension_numbers<[1], [0], [0], [1], [0, 0, 1, 1], [], []>} : vector<8x64xf32>, vector<64x128xf32>, vector<8x128xf32> -> vector<8x128xf32>
    %c0_3 = arith.constant 0 : index
    %c0_4 = arith.constant 0 : index
    %3 = vector.load %arg3[%c0_3, %c0_4] : memref<1x128xf32, #tpu.memory_space<vmem>>, vector<1x128xf32>
    %4 = vector.broadcast %3 : vector<1x128xf32> to vector<8x128xf32>
    %5 = arith.addf %2, %4 : vector<8x128xf32>
    %cst_5 = arith.constant 0.000000e+00 : f32
    %6 = vector.broadcast %cst_5 : f32 to vector<8x128xf32>
    %7 = arith.maximumf %5, %6 : vector<8x128xf32>
    %c0_6 = arith.constant 0 : index
    %c0_7 = arith.constant 0 : index
    %8 = vector.load %arg4[%c0_6, %c0_7] : memref<128x128xf32, #tpu.memory_space<vmem>>, vector<128x128xf32>
    %cst_8 = arith.constant dense<0.000000e+00> : vector<8x128xf32>
    %9 = tpu.matmul %7, %8, %cst_8 {dimension_numbers = #tpu.dot_dimension_numbers<[1], [0], [0], [1], [0, 0, 1, 1], [], []>} : vector<8x128xf32>, vector<128x128xf32>, vector<8x128xf32> -> vector<8x128xf32>
    %c0_9 = arith.constant 0 : index
    %c0_10 = arith.constant 0 : index
    %10 = vector.load %arg5[%c0_9, %c0_10] : memref<1x128xf32, #tpu.memory_space<vmem>>, vector<1x128xf32>
    %11 = vector.broadcast %10 : vector<1x128xf32> to vector<8x128xf32>
    %12 = arith.addf %9, %11 : vector<8x128xf32>
    %c0_11 = arith.constant 0 : index
    %c0_12 = arith.constant 0 : index
    %13 = vector.load %arg6[%c0_11, %c0_12] : memref<8x128xf32, #tpu.memory_space<vmem>>, vector<8x128xf32>
    tpu.vector_store %arg6[%c0_11, %c0_12], %12 {strides = array<i32>} : memref<8x128xf32, #tpu.memory_space<vmem>>, vector<8x128xf32>,
    return
  }
  func.func @transform_0(%arg0: i32) -> (i32, i32) {
    %c0_i32 = arith.constant 0 : i32
    %c0_i32_0 = arith.constant 0 : i32
    return %arg0, %c0_i32 : i32, i32
  }
  func.func @transform_1(%arg0: i32) -> (i32, i32) {
    %c0_i32 = arith.constant 0 : i32
    %c0_i32_0 = arith.constant 0 : i32
    %c0_i32_1 = arith.constant 0 : i32
    return %c0_i32, %c0_i32_0 : i32, i32
  }
  func.func @transform_2(%arg0: i32) -> (i32, i32) {
    %c0_i32 = arith.constant 0 : i32
    %c0_i32_0 = arith.constant 0 : i32
    %c0_i32_1 = arith.constant 0 : i32
    return %c0_i32, %c0_i32_0 : i32, i32
  }
  func.func @transform_3(%arg0: i32) -> (i32, i32) {
    %c0_i32 = arith.constant 0 : i32
    %c0_i32_0 = arith.constant 0 : i32
    %c0_i32_1 = arith.constant 0 : i32
    return %c0_i32, %c0_i32_0 : i32, i32
  }
  func.func @transform_4(%arg0: i32) -> (i32, i32) {
    %c0_i32 = arith.constant 0 : i32
    %c0_i32_0 = arith.constant 0 : i32
    %c0_i32_1 = arith.constant 0 : i32
    return %c0_i32, %c0_i32_0 : i32, i32
  }
  func.func @transform_5(%arg0: i32) -> (i32, i32) {
    %c0_i32 = arith.constant 0 : i32
    %c0_i32_0 = arith.constant 0 : i32
    return %arg0, %c0_i32 : i32, i32
  }
}

</mosaic_0001>

<llo_original>
// kernel: tpu_custom_call.1
$region0: #{tpu_custom_call.1}
  #allocation0 [shape = 'u32[]', space=smem, size = 0x4, offset = 0x4, fixed_abs, tag = 'smem constant byte address 0x4 - core index']
  #allocation1 [shape = 'u32[72,128]{1,0:T(1,128)}', space=vmem, size = 0x9000, scoped, tag = 'internal scratch']
  %s0 = inlined_call_operand.hbm [shape: f32[8,64], index: 0, kind: input, shape index: {}]
  %s1 = inlined_call_operand.hbm [shape: f32[64,128], index: 1, kind: input, shape index: {}]
  %s2 = inlined_call_operand.vmem [shape: f32[1,128], index: 2, kind: input, shape index: {}]
  %s3 = inlined_call_operand.hbm [shape: f32[128,128], index: 3, kind: input, shape index: {}]
  %s4 = inlined_call_operand.vmem [shape: f32[1,128], index: 4, kind: input, shape index: {}]
  %s5 = inlined_call_operand.hbm [shape: f32[8,128], index: 5, kind: output, shape index: {}]
  %s6 = sld [smem:[#allocation0]]
  $region42: #{tpu_custom_call.1} parent=0
    _
  %s8 = ssub.s32 1, %s6
  %s9 = scalar_select 0, %s8, %s6
  $region1: #{tpu_custom_call.1} parent=0
    #allocation2 [shape = 'u8[4096]{0}', space=vmem, size = 0x1000, scoped, tag = 'input window, operand 0, single buffered']
    #allocation3 [shape = 's32[1]{0}', space=sflag, size = 0x4, scoped, tag = 'scoped memory for tpu_custom_call.1']
    #allocation4 [shape = 's32[1]{0}', space=sflag, size = 0x4, scoped, tag = 'scoped memory for tpu_custom_call.1']
    #allocation5 [shape = 'u8[32768]{0}', space=vmem, size = 0x8000, scoped, tag = 'input window, operand 1, single buffered']
    #allocation6 [shape = 's32[1]{0}', space=sflag, size = 0x4, scoped, tag = 'scoped memory for tpu_custom_call.1']
    #allocation7 [shape = 'u8[65536]{0}', space=vmem, size = 0x10000, scoped, tag = 'input window, operand 3, single buffered']
    #allocation8 [shape = 'u8[4096]{0}', space=vmem, size = 0x1000, scoped, tag = 'output window, operand 0, single buffered']
    %10 = vsyncpa [#allocation3], 0
    %11 = vsyncpa [#allocation6], 0
    %12 = vsyncpa [#allocation4], 0
    // Predicated region
    $region2: #{tpu_custom_call.1} parent=1 // pred_check
      _
    $region3: #{tpu_custom_call.1} parent=1 // pred_check_branch
      %14 = sbr.rel (0) target = $region5
    $region4: #{tpu_custom_call.1} parent=1 // pred_region
      %16 = vsyncadd [#allocation3], 0
      %s18 = sshll.u32 %s0, 4
      %s19 = int_to_ptr.hbm [resolvable:$true] %s18
      %s20 = sshll.u32 [#allocation2], 4
      %s21 = int_to_ptr.vmem [resolvable:$true] %s20
      %23 = dma.hbm_to_vmem [thread:$0]  %s19, 128, %s21, [#allocation3]
    $region5: #{tpu_custom_call.1} parent=1 // pred_fallthru
      _
    // Predicated region
    $region6: #{tpu_custom_call.1} parent=1 // pred_check
      _
    $region7: #{tpu_custom_call.1} parent=1 // pred_check_branch
      %25 = sbr.rel (0) target = $region9
    $region8: #{tpu_custom_call.1} parent=1 // pred_region
      %27 = vsyncadd [#allocation6], 0
      %s28 = sshll.u32 %s1, 4
      %s29 = int_to_ptr.hbm [resolvable:$true] %s28
      %s30 = sshll.u32 [#allocation5], 4
      %s31 = int_to_ptr.vmem [resolvable:$true] %s30
      %36 = dma.hbm_to_vmem [thread:$0]  %s29, 1024, %s31, [#allocation6], 128, 128, 8
    $region9: #{tpu_custom_call.1} parent=1 // pred_fallthru
      _
    // Predicated region
    $region10: #{tpu_custom_call.1} parent=1 // pred_check
      _
    $region11: #{tpu_custom_call.1} parent=1 // pred_check_branch
      %38 = sbr.rel (0) target = $region13
    $region12: #{tpu_custom_call.1} parent=1 // pred_region
      _
    $region13: #{tpu_custom_call.1} parent=1 // pred_fallthru
      _
    // Predicated region
    $region14: #{tpu_custom_call.1} parent=1 // pred_check
      _
    $region15: #{tpu_custom_call.1} parent=1 // pred_check_branch
      %40 = sbr.rel (0) target = $region17
    $region16: #{tpu_custom_call.1} parent=1 // pred_region
      %42 = vsyncadd [#allocation6], 0
      %s43 = sshll.u32 %s3, 4
      %s44 = int_to_ptr.hbm [resolvable:$true] %s43
      %s45 = sshll.u32 [#allocation7], 4
      %s46 = int_to_ptr.vmem [resolvable:$true] %s45
      %51 = dma.hbm_to_vmem [thread:$0]  %s44, 2048, %s46, [#allocation6], 128, 128, 8
    $region17: #{tpu_custom_call.1} parent=1 // pred_fallthru
      _
    // Predicated region
    $region18: #{tpu_custom_call.1} parent=1 // pred_check
      _
    $region19: #{tpu_custom_call.1} parent=1 // pred_check_branch
      %53 = sbr.rel (0) target = $region21
    $region20: #{tpu_custom_call.1} parent=1 // pred_region
      _
    $region21: #{tpu_custom_call.1} parent=1 // pred_fallthru
      _
    // Predicated region
    $region22: #{tpu_custom_call.1} parent=1 // pred_check
      _
    $region23: #{tpu_custom_call.1} parent=1 // pred_check_branch
      %55 = sbr.rel (0) target = $region25
    $region24: #{tpu_custom_call.1} parent=1 // pred_region
      %57 = dma.done [#allocation3], 128
    $region25: #{tpu_custom_call.1} parent=1 // pred_fallthru
      _
    // Predicated region
    $region26: #{tpu_custom_call.1} parent=1 // pred_check
      _
    $region27: #{tpu_custom_call.1} parent=1 // pred_check_branch
      %59 = sbr.rel (0) target = $region29
    $region28: #{tpu_custom_call.1} parent=1 // pred_region
      %61 = dma.done [#allocation6], 1024
    $region29: #{tpu_custom_call.1} parent=1 // pred_fallthru
      _
    // Predicated region
    $region30: #{tpu_custom_call.1} parent=1 // pred_check
      _
    $region31: #{tpu_custom_call.1} parent=1 // pred_check_branch
      %63 = sbr.rel (0) target = $region33
    $region32: #{tpu_custom_call.1} parent=1 // pred_region
      %65 = dma.done [#allocation6], 2048
    $region33: #{tpu_custom_call.1} parent=1 // pred_fallthru
      _
    %v66 = vld [vmem:[#allocation2] sm:$0xff]
    %v67 = vld [vmem:[#allocation5] sm:$0xff]
    %v68 = vld [vmem:[#allocation5 + $0x8] sm:$0xff]
    %v69 = vld [vmem:[#allocation5 + $0x10] sm:$0xff]
    %v70 = vld [vmem:[#allocation5 + $0x18] sm:$0xff]
    %v71 = vld [vmem:[#allocation5 + $0x20] sm:$0xff]
    %v72 = vld [vmem:[#allocation5 + $0x28] sm:$0xff]
    %v73 = vld [vmem:[#allocation5 + $0x30] sm:$0xff]
    %v74 = vld [vmem:[#allocation5 + $0x38] sm:$0xff]
    %v75 = vld [vmem:[%s2] sm:$0x1]
    %v77 = vperm.slane %v75, 0
    %vm79 = vcmask 523264
    %v81 = vsel %vm79, %v66, 0
    %83 = vmatpush.msra.mxu0 0.0
    %84 = vmatpush.msra.mxu0 0.0
    %85 = vmatpush.msra.mxu0 0.0
    %86 = vmatpush.msra.mxu0 0.0
    %87 = vmatpush.msra.mxu0 0.0
    %88 = vmatpush.msra.mxu0 0.0
    %89 = vmatpush.msra.mxu0 0.0
    %90 = vmatpush.msra.mxu0 0.0
    %91 = vmatpush.msra.mxu0 %v74
    %92 = vmatpush.msra.mxu0 %v73
    %93 = vmatpush.msra.mxu0 %v72
    %94 = vmatpush.msra.mxu0 %v71
    %95 = vmatpush.msra.mxu0 %v70
    %96 = vmatpush.msra.mxu0 %v69
    %97 = vmatpush.msra.mxu0 %v68
    %98 = vmatpush.msra.mxu0 %v67
    %99 = vmatmul.f32.gmra.mxu0 %v81
    %v100 = vpop.f32.mrf.mxu0
    %v101 = vadd.f32 %v77, %v100
    %102 = vdwg.mxu0
    %v103 = vmax.f32 %v101, 0.0
    %v104 = vld [vmem:[#allocation7] sm:$0xff]
    %v105 = vld [vmem:[#allocation7 + $0x8] sm:$0xff]
    %v106 = vld [vmem:[#allocation7 + $0x10] sm:$0xff]
    %v107 = vld [vmem:[#allocation7 + $0x18] sm:$0xff]
    %v108 = vld [vmem:[#allocation7 + $0x20] sm:$0xff]
    %v109 = vld [vmem:[#allocation7 + $0x28] sm:$0xff]
    %v110 = vld [vmem:[#allocation7 + $0x30] sm:$0xff]
    %v111 = vld [vmem:[#allocation7 + $0x38] sm:$0xff]
    %v112 = vld [vmem:[#allocation7 + $0x40] sm:$0xff]
    %v113 = vld [vmem:[#allocation7 + $0x48] sm:$0xff]
    %v114 = vld [vmem:[#allocation7 + $0x50] sm:$0xff]
    %v115 = vld [vmem:[#allocation7 + $0x58] sm:$0xff]
    %v116 = vld [vmem:[#allocation7 + $0x60] sm:$0xff]
    %v117 = vld [vmem:[#allocation7 + $0x68] sm:$0xff]
    %v118 = vld [vmem:[#allocation7 + $0x70] sm:$0xff]
    %v119 = vld [vmem:[#allocation7 + $0x78] sm:$0xff]
    %v120 = vld [vmem:[%s4] sm:$0x1]
    %v122 = vperm.slane %v120, 0
    %124 = vmatpush.msra.mxu0 %v119
    %125 = vmatpush.msra.mxu0 %v118
    %126 = vmatpush.msra.mxu0 %v117
    %127 = vmatpush.msra.mxu0 %v116
    %128 = vmatpush.msra.mxu0 %v115
    %129 = vmatpush.msra.mxu0 %v114
    %130 = vmatpush.msra.mxu0 %v113
    %131 = vmatpush.msra.mxu0 %v112
    %132 = vmatpush.msra.mxu0 %v111
    %133 = vmatpush.msra.mxu0 %v110
    %134 = vmatpush.msra.mxu0 %v109
    %135 = vmatpush.msra.mxu0 %v108
    %136 = vmatpush.msra.mxu0 %v107
    %137 = vmatpush.msra.mxu0 %v106
    %138 = vmatpush.msra.mxu0 %v105
    %139 = vmatpush.msra.mxu0 %v104
    %140 = vmatmul.f32.gmra.mxu0 %v103
    %v141 = vpop.f32.mrf.mxu0
    %v142 = vadd.f32 %v122, %v141
    %143 = vdwg.mxu0
    %144 = vst [vmem:[#allocation8] sm:$0xff] %v142
    // Predicated region
    $region34: #{tpu_custom_call.1} parent=1 // pred_check
      _
    $region35: #{tpu_custom_call.1} parent=1 // pred_check_branch
      %146 = sbr.rel (0) target = $region37
    $region36: #{tpu_custom_call.1} parent=1 // pred_region
      %148 = vsyncadd [#allocation4], 0
      %s150 = sshll.u32 [#allocation8], 4
      %s151 = int_to_ptr.vmem [resolvable:$true] %s150
      %s152 = sshll.u32 %s5, 4
      %s153 = int_to_ptr.hbm [resolvable:$true] %s152
      %155 = dma.vmem_to_hbm [thread:$0]  %s151, 128, %s153, [#allocation4]
    $region37: #{tpu_custom_call.1} parent=1 // pred_fallthru
      _
    // Predicated region
    $region38: #{tpu_custom_call.1} parent=1 // pred_check
      _
    $region39: #{tpu_custom_call.1} parent=1 // pred_check_branch
      %157 = sbr.rel (0) target = $region41
    $region40: #{tpu_custom_call.1} parent=1 // pred_region
      %159 = dma.done [#allocation4], 128
    $region41: #{tpu_custom_call.1} parent=1 // pred_fallthru
      _
    %160 = vsyncpa [#allocation3], 1
    %161 = vsyncpa [#allocation6], 1
    %162 = vsyncpa [#allocation4], 1

// kernel: tpu_custom_call.1
$region0: #{tpu_custom_call.1}
  #allocation0 [shape = 'u32[]', space=smem, size = 0x4, offset = 0x4, fixed_abs, tag = 'smem constant byte address 0x4 - core index']
  #allocation1 [shape = 'u32[72,128]{1,0:T(1,128)}', space=vmem, size = 0x9000, scoped, tag = 'internal scratch']
  %s0 = inlined_call_operand.hbm [shape: f32[8,64], index: 0, kind: input, shape index: {}]
  %s1 = inlined_call_operand.hbm [shape: f32[64,128], index: 1, kind: input, shape index: {}]
  %s2 = inlined_call_operand.vmem [shape: f32[1,128], index: 2, kind: input, shape index: {}]
  %s3 = inlined_call_operand.hbm [shape: f32[128,128], index: 3, kind: input, shape index: {}]
  %s4 = inlined_call_operand.vmem [shape: f32[1,128], index: 4, kind: input, shape index: {}]
  %s5 = inlined_call_operand.hbm [shape: f32[8,128], index: 5, kind: output, shape index: {}]
  %s6 = sld [smem:[#allocation0]]
  $region42: #{tpu_custom_call.1} parent=0
    _
  %s8 = ssub.s32 1, %s6
  %s9 = scalar_select 0, %s8, %s6
  $region1: #{tpu_custom_call.1} parent=0
    #allocation2 [shape = 'u8[4096]{0}', space=vmem, size = 0x1000, scoped, tag = 'input window, operand 0, single buffered']
    #allocation3 [shape = 's32[1]{0}', space=sflag, size = 0x4, scoped, tag = 'scoped memory for tpu_custom_call.1']
    #allocation4 [shape = 's32[1]{0}', space=sflag, size = 0x4, scoped, tag = 'scoped memory for tpu_custom_call.1']
    #allocation5 [shape = 'u8[32768]{0}', space=vmem, size = 0x8000, scoped, tag = 'input window, operand 1, single buffered']
    #allocation6 [shape = 's32[1]{0}', space=sflag, size = 0x4, scoped, tag = 'scoped memory for tpu_custom_call.1']
    #allocation7 [shape = 'u8[65536]{0}', space=vmem, size = 0x10000, scoped, tag = 'input window, operand 3, single buffered']
    #allocation8 [shape = 'u8[4096]{0}', space=vmem, size = 0x1000, scoped, tag = 'output window, operand 0, single buffered']
    %10 = vsyncpa [#allocation3], 0
    %11 = vsyncpa [#allocation6], 0
    %12 = vsyncpa [#allocation4], 0
    // Predicated region
    $region2: #{tpu_custom_call.1} parent=1 // pred_check
      _
    $region3: #{tpu_custom_call.1} parent=1 // pred_check_branch
      %14 = sbr.rel (0) target = $region5
    $region4: #{tpu_custom_call.1} parent=1 // pred_region
      %16 = vsyncadd [#allocation3], 0
      %s18 = sshll.u32 %s0, 4
      %s19 = int_to_ptr.hbm [resolvable:$true] %s18
      %s20 = sshll.u32 [#allocation2], 4
      %s21 = int_to_ptr.vmem [resolvable:$true] %s20
      %23 = dma.hbm_to_vmem [thread:$0]  %s19, 128, %s21, [#allocation3]
    $region5: #{tpu_custom_call.1} parent=1 // pred_fallthru
      _
    // Predicated region
    $region6: #{tpu_custom_call.1} parent=1 // pred_check
      _
    $region7: #{tpu_custom_call.1} parent=1 // pred_check_branch
      %25 = sbr.rel (0) target = $region9
    $region8: #{tpu_custom_call.1} parent=1 // pred_region
      %27 = vsyncadd [#allocation6], 0
      %s28 = sshll.u32 %s1, 4
      %s29 = int_to_ptr.hbm [resolvable:$true] %s28
      %s30 = sshll.u32 [#allocation5], 4
      %s31 = int_to_ptr.vmem [resolvable:$true] %s30
      %36 = dma.hbm_to_vmem [thread:$0]  %s29, 1024, %s31, [#allocation6], 128, 128, 8
    $region9: #{tpu_custom_call.1} parent=1 // pred_fallthru
      _
    // Predicated region
    $region10: #{tpu_custom_call.1} parent=1 // pred_check
      _
    $region11: #{tpu_custom_call.1} parent=1 // pred_check_branch
      %38 = sbr.rel (0) target = $region13
    $region12: #{tpu_custom_call.1} parent=1 // pred_region
      _
    $region13: #{tpu_custom_call.1} parent=1 // pred_fallthru
      _
    // Predicated region
    $region14: #{tpu_custom_call.1} parent=1 // pred_check
      _
    $region15: #{tpu_custom_call.1} parent=1 // pred_check_branch
      %40 = sbr.rel (0) target = $region17
    $region16: #{tpu_custom_call.1} parent=1 // pred_region
      %42 = vsyncadd [#allocation6], 0
      %s43 = sshll.u32 %s3, 4
      %s44 = int_to_ptr.hbm [resolvable:$true] %s43
      %s45 = sshll.u32 [#allocation7], 4
      %s46 = int_to_ptr.vmem [resolvable:$true] %s45
      %51 = dma.hbm_to_vmem [thread:$0]  %s44, 2048, %s46, [#allocation6], 128, 128, 8
    $region17: #{tpu_custom_call.1} parent=1 // pred_fallthru
      _
    // Predicated region
    $region18: #{tpu_custom_call.1} parent=1 // pred_check
      _
    $region19: #{tpu_custom_call.1} parent=1 // pred_check_branch
      %53 = sbr.rel (0) target = $region21
    $region20: #{tpu_custom_call.1} parent=1 // pred_region
      _
    $region21: #{tpu_custom_call.1} parent=1 // pred_fallthru
      _
    // Predicated region
    $region22: #{tpu_custom_call.1} parent=1 // pred_check
      _
    $region23: #{tpu_custom_call.1} parent=1 // pred_check_branch
      %55 = sbr.rel (0) target = $region25
    $region24: #{tpu_custom_call.1} parent=1 // pred_region
      %57 = dma.done [#allocation3], 128
    $region25: #{tpu_custom_call.1} parent=1 // pred_fallthru
      _
    // Predicated region
    $region26: #{tpu_custom_call.1} parent=1 // pred_check
      _
    $region27: #{tpu_custom_call.1} parent=1 // pred_check_branch
      %59 = sbr.rel (0) target = $region29
    $region28: #{tpu_custom_call.1} parent=1 // pred_region
      %61 = dma.done [#allocation6], 1024
    $region29: #{tpu_custom_call.1} parent=1 // pred_fallthru
      _
    // Predicated region
    $region30: #{tpu_custom_call.1} parent=1 // pred_check
      _
    $region31: #{tpu_custom_call.1} parent=1 // pred_check_branch
      %63 = sbr.rel (0) target = $region33
    $region32: #{tpu_custom_call.1} parent=1 // pred_region
      %65 = dma.done [#allocation6], 2048
    $region33: #{tpu_custom_call.1} parent=1 // pred_fallthru
      _
    %v66 = vld [vmem:[#allocation2] sm:$0xff]
    %v67 = vld [vmem:[#allocation5] sm:$0xff]
    %v68 = vld [vmem:[#allocation5 + $0x8] sm:$0xff]
    %v69 = vld [vmem:[#allocation5 + $0x10] sm:$0xff]
    %v70 = vld [vmem:[#allocation5 + $0x18] sm:$0xff]
    %v71 = vld [vmem:[#allocation5 + $0x20] sm:$0xff]
    %v72 = vld [vmem:[#allocation5 + $0x28] sm:$0xff]
    %v73 = vld [vmem:[#allocation5 + $0x30] sm:$0xff]
    %v74 = vld [vmem:[#allocation5 + $0x38] sm:$0xff]
    %v75 = vld [vmem:[%s2] sm:$0x1]
    %v77 = vperm.slane %v75, 0
    %vm79 = vcmask 523264
    %v81 = vsel %vm79, %v66, 0
    %83 = vmatpush.msra.mxu0 0.0
    %84 = vmatpush.msra.mxu0 0.0
    %85 = vmatpush.msra.mxu0 0.0
    %86 = vmatpush.msra.mxu0 0.0
    %87 = vmatpush.msra.mxu0 0.0
    %88 = vmatpush.msra.mxu0 0.0
    %89 = vmatpush.msra.mxu0 0.0
    %90 = vmatpush.msra.mxu0 0.0
    %91 = vmatpush.msra.mxu0 %v74
    %92 = vmatpush.msra.mxu0 %v73
    %93 = vmatpush.msra.mxu0 %v72
    %94 = vmatpush.msra.mxu0 %v71
    %95 = vmatpush.msra.mxu0 %v70
    %96 = vmatpush.msra.mxu0 %v69
    %97 = vmatpush.msra.mxu0 %v68
    %98 = vmatpush.msra.mxu0 %v67
    %99 = vmatmul.f32.gmra.mxu0 %v81
    %v100 = vpop.f32.mrf.mxu0
    %v101 = vadd.f32 %v77, %v100
    %102 = vdwg.mxu0
    %v103 = vmax.f32 %v101, 0.0
    %v104 = vld [vmem:[#allocation7] sm:$0xff]
    %v105 = vld [vmem:[#allocation7 + $0x8] sm:$0xff]
    %v106 = vld [vmem:[#allocation7 + $0x10] sm:$0xff]
    %v107 = vld [vmem:[#allocation7 + $0x18] sm:$0xff]
    %v108 = vld [vmem:[#allocation7 + $0x20] sm:$0xff]
    %v109 = vld [vmem:[#allocation7 + $0x28] sm:$0xff]
    %v110 = vld [vmem:[#allocation7 + $0x30] sm:$0xff]
    %v111 = vld [vmem:[#allocation7 + $0x38] sm:$0xff]
    %v112 = vld [vmem:[#allocation7 + $0x40] sm:$0xff]
    %v113 = vld [vmem:[#allocation7 + $0x48] sm:$0xff]
    %v114 = vld [vmem:[#allocation7 + $0x50] sm:$0xff]
    %v115 = vld [vmem:[#allocation7 + $0x58] sm:$0xff]
    %v116 = vld [vmem:[#allocation7 + $0x60] sm:$0xff]
    %v117 = vld [vmem:[#allocation7 + $0x68] sm:$0xff]
    %v118 = vld [vmem:[#allocation7 + $0x70] sm:$0xff]
    %v119 = vld [vmem:[#allocation7 + $0x78] sm:$0xff]
    %v120 = vld [vmem:[%s4] sm:$0x1]
    %v122 = vperm.slane %v120, 0
    %124 = vmatpush.msra.mxu0 %v119
    %125 = vmatpush.msra.mxu0 %v118
    %126 = vmatpush.msra.mxu0 %v117
    %127 = vmatpush.msra.mxu0 %v116
    %128 = vmatpush.msra.mxu0 %v115
    %129 = vmatpush.msra.mxu0 %v114
    %130 = vmatpush.msra.mxu0 %v113
    %131 = vmatpush.msra.mxu0 %v112
    %132 = vmatpush.msra.mxu0 %v111
    %133 = vmatpush.msra.mxu0 %v110
    %134 = vmatpush.msra.mxu0 %v109
    %135 = vmatpush.msra.mxu0 %v108
    %136 = vmatpush.msra.mxu0 %v107
    %137 = vmatpush.msra.mxu0 %v106
    %138 = vmatpush.msra.mxu0 %v105
    %139 = vmatpush.msra.mxu0 %v104
    %140 = vmatmul.f32.gmra.mxu0 %v103
    %v141 = vpop.f32.mrf.mxu0
    %v142 = vadd.f32 %v122, %v141
    %143 = vdwg.mxu0
    %144 = vst [vmem:[#allocation8] sm:$0xff] %v142
    // Predicated region
    $region34: #{tpu_custom_call.1} parent=1 // pred_check
      _
    $region35: #{tpu_custom_call.1} parent=1 // pred_check_branch
      %146 = sbr.rel (0) target = $region37
    $region36: #{tpu_custom_call.1} parent=1 // pred_region
      %148 = vsyncadd [#allocation4], 0
      %s150 = sshll.u32 [#allocation8], 4
      %s151 = int_to_ptr.vmem [resolvable:$true] %s150
      %s152 = sshll.u32 %s5, 4
      %s153 = int_to_ptr.hbm [resolvable:$true] %s152
      %155 = dma.vmem_to_hbm [thread:$0]  %s151, 128, %s153, [#allocation4]
    $region37: #{tpu_custom_call.1} parent=1 // pred_fallthru
      _
    // Predicated region
    $region38: #{tpu_custom_call.1} parent=1 // pred_check
      _
    $region39: #{tpu_custom_call.1} parent=1 // pred_check_branch
      %157 = sbr.rel (0) target = $region41
    $region40: #{tpu_custom_call.1} parent=1 // pred_region
      %159 = dma.done [#allocation4], 128
    $region41: #{tpu_custom_call.1} parent=1 // pred_fallthru
      _
    %160 = vsyncpa [#allocation3], 1
    %161 = vsyncpa [#allocation6], 1
    %162 = vsyncpa [#allocation4], 1

</llo_original>
